<compile_context>
chip_gen: v7x
topology: tpu7x:2x2x1
jax: 0.10.0
libtpu: 0.0.40
codegen_flags: <defaults>
</compile_context>

<pallas_src>
import jax
import jax.numpy as jnp
from jax.experimental import pallas as pl
from jax.experimental.pallas import tpu as pltpu


def ggd_kernel(theta_ref, t_ref, a_ref, x_ref, alpha_ref, wt_ref, b_ref,
               out_ref, acc_ref):
    k = pl.program_id(1)
    nk = pl.num_programs(1)

    @pl.when(k == 0)
    def _init():
        acc_ref[...] = jnp.zeros_like(acc_ref)

    # theta-weighted combine of the diffusion slices, restricted to this
    # (tm, tk) tile.  S is small and static -> unrolled; the intermediate is a
    # single tile, so it never spills like the old full-(N,N) combine did.
    S = t_ref.shape[0]
    q = theta_ref[0] * t_ref[0]
    for s in range(1, S):
        q = q + theta_ref[s] * t_ref[s]
    q = q * a_ref[...]                               # adjacency mask

    # Partial contraction:  h[row_tile, :] += q_tile @ x_tile   (MXU, f32 acc)
    acc_ref[...] += jnp.dot(q, x_ref[...], preferred_element_type=jnp.float32)

    # Fused epilogue on the last contraction step: PReLU + Linear + bias.
    @pl.when(k == nk - 1)
    def _finalize():
        h = acc_ref[...]
        alpha = alpha_ref[...]                       # (1, D_in_pad) -> rows broadcast
        h = jnp.where(h >= 0.0, h, alpha * h)        # PReLU, per-feature slope
        out = jnp.dot(h, wt_ref[...],
                      preferred_element_type=jnp.float32) + b_ref[...]
        out_ref[...] = out.astype(out_ref.dtype)


def _pad_to(arr, target_shape):
    pads = [(0, t - s) for s, t in zip(arr.shape, target_shape)]
    return jnp.pad(arr, pads)


def ggd_forward(theta, t_slices, x, a, prelu_alpha, fc_weight, fc_bias,
                *, tm=128, tk=128):
    """theta:(S,) t_slices:(S,N,N) x:(N,Din) a:(N,N)
       prelu_alpha:(Din,) fc_weight:(Dout,Din) fc_bias:(Dout,) -> (N,Dout)"""
    S = theta.shape[0]
    N, d_in = x.shape
    d_out = fc_weight.shape[0]

    LANE = 128
    d_in_p = pl.cdiv(d_in, LANE) * LANE              # lane-dense feature dims
    d_out_p = pl.cdiv(d_out, LANE) * LANE
    n_r = pl.cdiv(N, tm) * tm                        # padded row dim
    n_c = pl.cdiv(N, tk) * tk                        # padded contraction dim

    # Zero-pad on host: zero q rows/cols and zero x/W/bias padding contribute
    # nothing, so results are exact after slicing.
    t_p = _pad_to(t_slices, (S, n_r, n_c))
    a_p = _pad_to(a, (n_r, n_c))
    x_p = _pad_to(x, (n_c, d_in_p))
    alpha_p = _pad_to(prelu_alpha.reshape(1, d_in), (1, d_in_p))
    wt_p = _pad_to(fc_weight.T, (d_in_p, d_out_p))   # (D_in_p, D_out_p)
    b_p = _pad_to(fc_bias.reshape(1, d_out), (1, d_out_p))

    grid = (n_r // tm, n_c // tk)

    flops = (2 * S * n_r * n_c                       # theta combine + mask
             + 2 * n_r * n_c * d_in_p                # q @ x
             + 2 * n_r * d_in_p * d_out_p)           # h @ W^T
    bytes_accessed = 4 * (S * n_r * n_c + n_r * n_c + n_c * d_in_p
                          + d_in_p * d_out_p + n_r * d_out_p)

    out_p = pl.pallas_call(
        ggd_kernel,
        out_shape=jax.ShapeDtypeStruct((n_r, d_out_p), x.dtype),
        grid_spec=pltpu.PrefetchScalarGridSpec(
            num_scalar_prefetch=1,                   # theta -> SMEM
            grid=grid,
            in_specs=[
                pl.BlockSpec((S, tm, tk),       lambda i, k, theta: (0, i, k)),
                pl.BlockSpec((tm, tk),          lambda i, k, theta: (i, k)),
                pl.BlockSpec((tk, d_in_p),      lambda i, k, theta: (k, 0)),
                pl.BlockSpec((1, d_in_p),       lambda i, k, theta: (0, 0)),
                pl.BlockSpec((d_in_p, d_out_p), lambda i, k, theta: (0, 0)),
                pl.BlockSpec((1, d_out_p),      lambda i, k, theta: (0, 0)),
            ],
            out_specs=pl.BlockSpec((tm, d_out_p), lambda i, k, theta: (i, 0)),
            scratch_shapes=[pltpu.VMEM((tm, d_in_p), jnp.float32)],
        ),
        compiler_params=pltpu.CompilerParams(
            dimension_semantics=("parallel", "arbitrary"),
            vmem_limit_bytes=32 * 1024 * 1024,       # safe on v5e/v6e/v7x
        ),
        cost_estimate=pl.CostEstimate(
            flops=flops, transcendentals=0, bytes_accessed=bytes_accessed),
    )(theta, t_p, a_p, x_p, alpha_p, wt_p, b_p)

    return out_p[:N, :d_out]


def ggd_reference(theta, t_slices, x, a, prelu_alpha, fc_weight, fc_bias):
    q = jnp.einsum('s,sij->ij', theta, t_slices)
    q = q * a
    out = q @ x
    out = jnp.where(out >= 0.0, out, prelu_alpha[None, :] * out)
    out = out @ fc_weight.T + fc_bias[None, :]
    return out


if __name__ == "__main__":
    # Small shapes consistent with the module's forward; N deliberately not a
    # multiple of the tile size to exercise the padding path.
    S, N, D_IN, D_OUT = 4, 200, 32, 16

    key = jax.random.PRNGKey(0)
    k_theta, k_T, k_x, k_a, k_w, k_b = jax.random.split(key, 6)

    theta = jax.random.normal(k_theta, (S,), dtype=jnp.float32)
    t_slices = jax.random.normal(k_T, (S, N, N), dtype=jnp.float32)
    x = jax.random.normal(k_x, (N, D_IN), dtype=jnp.float32)
    # adjacency-like mask (0/1), deterministic
    a = (jax.random.uniform(k_a, (N, N)) > 0.5).astype(jnp.float32)

    # Deterministic parameter init (synthetic, mirrors module __init__ shapes)
    fc_weight = 0.05 * jax.random.normal(k_w, (D_OUT, D_IN), dtype=jnp.float32)
    fc_bias = 0.01 * jax.random.normal(k_b, (D_OUT,), dtype=jnp.float32)
    prelu_alpha = jnp.full((D_IN,), 0.25, dtype=jnp.float32)  # PyTorch PReLU default

    out = ggd_forward(theta, t_slices, x, a, prelu_alpha, fc_weight, fc_bias)
    out = jax.block_until_ready(out)

    ref = ggd_reference(theta, t_slices, x, a, prelu_alpha, fc_weight, fc_bias)
    assert out.shape == (N, D_OUT)
    assert jnp.allclose(out, ref, atol=1e-3, rtol=1e-3), "mismatch vs reference"

    print("KERNEL_OK")
</pallas_src>

<mosaic_0001>
module attributes {stable_mosaic.version = 11 : i64} {
  func.func @ggd_kernel(%arg0: i32, %arg1: i32, %arg2: memref<4xf32, #tpu.memory_space<smem>>, %arg3: memref<4x128x128xf32, #tpu.memory_space<vmem>>, %arg4: memref<128x128xf32, #tpu.memory_space<vmem>>, %arg5: memref<128x128xf32, #tpu.memory_space<vmem>>, %arg6: memref<1x128xf32, #tpu.memory_space<vmem>>, %arg7: memref<128x128xf32, #tpu.memory_space<vmem>>, %arg8: memref<1x128xf32, #tpu.memory_space<vmem>>, %arg9: memref<128x128xf32, #tpu.memory_space<vmem>>, %arg10: memref<128x128xf32, #tpu.memory_space<vmem>>) attributes {dimension_semantics = [#tpu.dimension_semantics<parallel>, #tpu.dimension_semantics<arbitrary>], iteration_bounds = array<i64: 2, 2>, scalar_prefetch = 1 : i64, scratch_operands = 1 : i64, tpu.core_type = #tpu.core_type<tc>, window_params = [{transform_indices = @transform_0, window_bounds = array<i64: 4, 128, 128>}, {transform_indices = @transform_1, window_bounds = array<i64: 128, 128>}, {transform_indices = @transform_2, window_bounds = array<i64: 128, 128>}, {pipeline_mode = #tpu.pipeline_mode<synchronous>, transform_indices = @transform_3, window_bounds = array<i64: 1, 128>}, {pipeline_mode = #tpu.pipeline_mode<synchronous>, transform_indices = @transform_4, window_bounds = array<i64: 128, 128>}, {pipeline_mode = #tpu.pipeline_mode<synchronous>, transform_indices = @transform_5, window_bounds = array<i64: 1, 128>}, {transform_indices = @transform_6, window_bounds = array<i64: 128, 128>}]} {
    %c0_i32 = arith.constant 0 : i32
    %0 = arith.cmpi eq, %arg1, %c0_i32 : i32
    %1 = arith.extui %0 : i1 to i32
    %c0_i32_0 = arith.constant 0 : i32
    %2 = arith.cmpi ne, %1, %c0_i32_0 : i32
    scf.if %2 {
      %cst_22 = arith.constant 0.000000e+00 : f32
      %36 = vector.broadcast %cst_22 : f32 to vector<128x128xf32>
      %c0_23 = arith.constant 0 : index
      %c0_24 = arith.constant 0 : index
      %37 = vector.load %arg10[%c0_23, %c0_24] : memref<128x128xf32, #tpu.memory_space<vmem>>, vector<128x128xf32>
      tpu.vector_store %arg10[%c0_23, %c0_24], %36 {strides = array<i32>} : memref<128x128xf32, #tpu.memory_space<vmem>>, vector<128x128xf32>,
    } else {
    }
    %c0 = arith.constant 0 : index
    %3 = memref.load %arg2[%c0] : memref<4xf32, #tpu.memory_space<smem>>
    %c0_1 = arith.constant 0 : index
    %c0_2 = arith.constant 0 : index
    %c0_3 = arith.constant 0 : index
    %4 = vector.load %arg3[%c0_1, %c0_2, %c0_3] : memref<4x128x128xf32, #tpu.memory_space<vmem>>, vector<1x128x128xf32>
    %5 = vector.shape_cast %4 : vector<1x128x128xf32> to vector<128x128xf32>
    %6 = vector.broadcast %3 : f32 to vector<128x128xf32>
    %7 = arith.mulf %6, %5 : vector<128x128xf32>
    %c1 = arith.constant 1 : index
    %8 = memref.load %arg2[%c1] : memref<4xf32, #tpu.memory_space<smem>>
    %c1_4 = arith.constant 1 : index
    %c0_5 = arith.constant 0 : index
    %c0_6 = arith.constant 0 : index
    %9 = vector.load %arg3[%c1_4, %c0_5, %c0_6] : memref<4x128x128xf32, #tpu.memory_space<vmem>>, vector<1x128x128xf32>
    %10 = vector.shape_cast %9 : vector<1x128x128xf32> to vector<128x128xf32>
    %11 = vector.broadcast %8 : f32 to vector<128x128xf32>
    %12 = arith.mulf %11, %10 : vector<128x128xf32>
    %13 = arith.addf %7, %12 : vector<128x128xf32>
    %c2 = arith.constant 2 : index
    %14 = memref.load %arg2[%c2] : memref<4xf32, #tpu.memory_space<smem>>
    %c2_7 = arith.constant 2 : index
    %c0_8 = arith.constant 0 : index
    %c0_9 = arith.constant 0 : index
    %15 = vector.load %arg3[%c2_7, %c0_8, %c0_9] : memref<4x128x128xf32, #tpu.memory_space<vmem>>, vector<1x128x128xf32>
    %16 = vector.shape_cast %15 : vector<1x128x128xf32> to vector<128x128xf32>
    %17 = vector.broadcast %14 : f32 to vector<128x128xf32>
    %18 = arith.mulf %17, %16 : vector<128x128xf32>
    %19 = arith.addf %13, %18 : vector<128x128xf32>
    %c3 = arith.constant 3 : index
    %20 = memref.load %arg2[%c3] : memref<4xf32, #tpu.memory_space<smem>>
    %c3_10 = arith.constant 3 : index
    %c0_11 = arith.constant 0 : index
    %c0_12 = arith.constant 0 : index
    %21 = vector.load %arg3[%c3_10, %c0_11, %c0_12] : memref<4x128x128xf32, #tpu.memory_space<vmem>>, vector<1x128x128xf32>
    %22 = vector.shape_cast %21 : vector<1x128x128xf32> to vector<128x128xf32>
    %23 = vector.broadcast %20 : f32 to vector<128x128xf32>
    %24 = arith.mulf %23, %22 : vector<128x128xf32>
    %25 = arith.addf %19, %24 : vector<128x128xf32>
    %c0_13 = arith.constant 0 : index
    %c0_14 = arith.constant 0 : index
    %26 = vector.load %arg4[%c0_13, %c0_14] : memref<128x128xf32, #tpu.memory_space<vmem>>, vector<128x128xf32>
    %27 = arith.mulf %25, %26 : vector<128x128xf32>
    %c0_15 = arith.constant 0 : index
    %c0_16 = arith.constant 0 : index
    %28 = vector.load %arg10[%c0_15, %c0_16] : memref<128x128xf32, #tpu.memory_space<vmem>>, vector<128x128xf32>
    %c0_17 = arith.constant 0 : index
    %c0_18 = arith.constant 0 : index
    %29 = vector.load %arg5[%c0_17, %c0_18] : memref<128x128xf32, #tpu.memory_space<vmem>>, vector<128x128xf32>
    %cst = arith.constant dense<0.000000e+00> : vector<128x128xf32>
    %30 = tpu.matmul %27, %29, %cst {dimension_numbers = #tpu.dot_dimension_numbers<[1], [0], [0], [1], [0, 0, 1, 1], [], []>} : vector<128x128xf32>, vector<128x128xf32>, vector<128x128xf32> -> vector<128x128xf32>
    %31 = arith.addf %28, %30 : vector<128x128xf32>
    %c0_19 = arith.constant 0 : index
    %c0_20 = arith.constant 0 : index
    %32 = vector.load %arg10[%c0_19, %c0_20] : memref<128x128xf32, #tpu.memory_space<vmem>>, vector<128x128xf32>
    tpu.vector_store %arg10[%c0_19, %c0_20], %31 {strides = array<i32>} : memref<128x128xf32, #tpu.memory_space<vmem>>, vector<128x128xf32>,
    %c1_i32 = arith.constant 1 : i32
    %33 = arith.cmpi eq, %arg1, %c1_i32 : i32
    %34 = arith.extui %33 : i1 to i32
    %c0_i32_21 = arith.constant 0 : i32
    %35 = arith.cmpi ne, %34, %c0_i32_21 : i32
    scf.if %35 {
      %c0_22 = arith.constant 0 : index
      %c0_23 = arith.constant 0 : index
      %36 = vector.load %arg10[%c0_22, %c0_23] : memref<128x128xf32, #tpu.memory_space<vmem>>, vector<128x128xf32>
      %c0_24 = arith.constant 0 : index
      %c0_25 = arith.constant 0 : index
      %37 = vector.load %arg6[%c0_24, %c0_25] : memref<1x128xf32, #tpu.memory_space<vmem>>, vector<1x128xf32>
      %cst_26 = arith.constant 0.000000e+00 : f32
      %38 = vector.broadcast %cst_26 : f32 to vector<128x128xf32>
      %39 = arith.cmpf oge, %36, %38 : vector<128x128xf32>
      %40 = vector.broadcast %37 : vector<1x128xf32> to vector<128x128xf32>
      %41 = arith.mulf %40, %36 : vector<128x128xf32>
      %42 = arith.select %39, %36, %41 : vector<128x128xi1>, vector<128x128xf32>
      %c0_27 = arith.constant 0 : index
      %c0_28 = arith.constant 0 : index
      %43 = vector.load %arg7[%c0_27, %c0_28] : memref<128x128xf32, #tpu.memory_space<vmem>>, vector<128x128xf32>
      %cst_29 = arith.constant dense<0.000000e+00> : vector<128x128xf32>
      %44 = tpu.matmul %42, %43, %cst_29 {dimension_numbers = #tpu.dot_dimension_numbers<[1], [0], [0], [1], [0, 0, 1, 1], [], []>} : vector<128x128xf32>, vector<128x128xf32>, vector<128x128xf32> -> vector<128x128xf32>
      %c0_30 = arith.constant 0 : index
      %c0_31 = arith.constant 0 : index
      %45 = vector.load %arg8[%c0_30, %c0_31] : memref<1x128xf32, #tpu.memory_space<vmem>>, vector<1x128xf32>
      %46 = vector.broadcast %45 : vector<1x128xf32> to vector<128x128xf32>
      %47 = arith.addf %44, %46 : vector<128x128xf32>
      %c0_32 = arith.constant 0 : index
      %c0_33 = arith.constant 0 : index
      %48 = vector.load %arg9[%c0_32, %c0_33] : memref<128x128xf32, #tpu.memory_space<vmem>>, vector<128x128xf32>
      tpu.vector_store %arg9[%c0_32, %c0_33], %47 {strides = array<i32>} : memref<128x128xf32, #tpu.memory_space<vmem>>, vector<128x128xf32>,
    } else {
    }
    return
  }
  func.func @transform_0(%arg0: i32, %arg1: i32, %arg2: memref<4xf32, #tpu.memory_space<smem>>) -> (i32, i32, i32) {
    %c0_i32 = arith.constant 0 : i32
    %c0_i32_0 = arith.constant 0 : i32
    return %c0_i32, %arg0, %arg1 : i32, i32, i32
  }
  func.func @transform_1(%arg0: i32, %arg1: i32, %arg2: memref<4xf32, #tpu.memory_space<smem>>) -> (i32, i32) {
    %c0_i32 = arith.constant 0 : i32
    return %arg0, %arg1 : i32, i32
  }
  func.func @transform_2(%arg0: i32, %arg1: i32, %arg2: memref<4xf32, #tpu.memory_space<smem>>) -> (i32, i32) {
    %c0_i32 = arith.constant 0 : i32
    %c0_i32_0 = arith.constant 0 : i32
    return %arg1, %c0_i32 : i32, i32
  }
  func.func @transform_3(%arg0: i32, %arg1: i32, %arg2: memref<4xf32, #tpu.memory_space<smem>>) -> (i32, i32) {
    %c0_i32 = arith.constant 0 : i32
    %c0_i32_0 = arith.constant 0 : i32
    %c0_i32_1 = arith.constant 0 : i32
    return %c0_i32, %c0_i32_0 : i32, i32
  }
  func.func @transform_4(%arg0: i32, %arg1: i32, %arg2: memref<4xf32, #tpu.memory_space<smem>>) -> (i32, i32) {
    %c0_i32 = arith.constant 0 : i32
    %c0_i32_0 = arith.constant 0 : i32
    %c0_i32_1 = arith.constant 0 : i32
    return %c0_i32, %c0_i32_0 : i32, i32
  }
  func.func @transform_5(%arg0: i32, %arg1: i32, %arg2: memref<4xf32, #tpu.memory_space<smem>>) -> (i32, i32) {
    %c0_i32 = arith.constant 0 : i32
    %c0_i32_0 = arith.constant 0 : i32
    %c0_i32_1 = arith.constant 0 : i32
    return %c0_i32, %c0_i32_0 : i32, i32
  }
  func.func @transform_6(%arg0: i32, %arg1: i32, %arg2: memref<4xf32, #tpu.memory_space<smem>>) -> (i32, i32) {
    %c0_i32 = arith.constant 0 : i32
    %c0_i32_0 = arith.constant 0 : i32
    return %arg0, %c0_i32 : i32, i32
  }
}

</mosaic_0001>

<llo_original>
// kernel: tpu_custom_call.1
$region0: #{tpu_custom_call.1}
  #allocation0 [shape = 'u32[]', space=smem, size = 0x4, offset = 0x4, fixed_abs, tag = 'smem constant byte address 0x4 - core index']
  #allocation1 [shape = 'u32[144,128]{1,0:T(1,128)}', space=vmem, size = 0x12000, scoped, tag = 'internal scratch']
  #allocation2 [shape = 'f32[128,128]{1,0:T(8,128)}', space=vmem, size = 0x10000, scoped, tag = 'scratch operand']
  #allocation3 [shape = 's32[1]{0}', space=sflag, size = 0x4, scoped, tag = 'scoped memory for tpu_custom_call.1']
  #allocation4 [shape = 'u8[512]{0}', space=smem, size = 0x200, scoped, tag = 'prefetched SMEM operand 0']
  #allocation14 [shape = 's32[]', space=sflag, size = 0x4, offset = 0, fixed_abs, tag = 'sflag constant byte address 0x0 - dummy sync flag']
  %s0 = inlined_call_operand.hbm [shape: f32[4], index: 0, kind: input, shape index: {}]
  %s1 = inlined_call_operand.hbm [shape: f32[4,256,256], index: 1, kind: input, shape index: {}]
  %s2 = inlined_call_operand.hbm [shape: f32[256,256], index: 2, kind: input, shape index: {}]
  %s3 = inlined_call_operand.hbm [shape: f32[256,128], index: 3, kind: input, shape index: {}]
  %s4 = inlined_call_operand.vmem [shape: f32[1,128], index: 4, kind: input, shape index: {}]
  %s5 = inlined_call_operand.hbm [shape: f32[128,128], index: 5, kind: input, shape index: {}]
  %s6 = inlined_call_operand.vmem [shape: f32[1,128], index: 6, kind: input, shape index: {}]
  %s7 = inlined_call_operand.hbm [shape: f32[256,128], index: 7, kind: output, shape index: {}]
  %s8 = sld [smem:[#allocation0]]
  $region81: #{tpu_custom_call.1} parent=0
    _
  %s10 = ssub.s32 1, %s8
  %s11 = scalar_select 0, %s10, %s8
  %13 = dma.hbm_to_smem %s0, 16, [#allocation4], [#allocation3]
  %14 = dma.done [#allocation3], 16
  %15 = sfence
  $region1: #{tpu_custom_call.1} parent=0
    #allocation5 [shape = 'u8[524288]{0}', space=vmem, size = 0x80000, scoped, tag = 'input window, operand 1']
    #allocation6 [shape = 's32[2]{0}', space=sflag, size = 0x8, scoped, tag = 'scoped memory for tpu_custom_call.1']
    #allocation7 [shape = 's32[2]{0}', space=sflag, size = 0x8, scoped, tag = 'scoped memory for tpu_custom_call.1']
    #allocation8 [shape = 'u8[131072]{0}', space=vmem, size = 0x20000, scoped, tag = 'input window, operand 2']
    #allocation9 [shape = 's32[2]{0}', space=sflag, size = 0x8, scoped, tag = 'scoped memory for tpu_custom_call.1']
    #allocation10 [shape = 'u8[131072]{0}', space=vmem, size = 0x20000, scoped, tag = 'input window, operand 3']
    #allocation11 [shape = 'u8[65536]{0}', space=vmem, size = 0x10000, scoped, tag = 'input window, operand 5, single buffered']
    #allocation12 [shape = 's32[1]{0}', space=sflag, size = 0x4, scoped, tag = 'scoped memory for tpu_custom_call.1']
    #allocation13 [shape = 'u8[131072]{0}', space=vmem, size = 0x20000, scoped, tag = 'output window, operand 0']
    %16 = vsyncpa [#allocation6], 0
    %s17 = scalar_lea.sflag [#allocation6], 1
    %18 = vsyncpa %s17, 0
    %19 = vsyncpa [#allocation9], 0
    %s20 = scalar_lea.sflag [#allocation9], 1
    %21 = vsyncpa %s20, 0
    %22 = vsyncpa [#allocation12], 0
    %23 = vsyncpa [#allocation7], 0
    %s24 = scalar_lea.sflag [#allocation7], 1
    %25 = vsyncpa %s24, 0
    loop: start=0, step=1, limit=6
    $region2: #{tpu_custom_call.1} parent=1 // loop_pre_header
      _
    $region3: #{tpu_custom_call.1} parent=1 // loop_header
      %s27 = sphi 0, %s31
      %p28 = scmp.ge.s32.totalorder %s27, 6
      %s34 = sphi 0, %s46
      %s35 = sphi 0, %s42
      %s36 = sphi 0, %s34
      %s37 = sphi 0, %s35
      %s38 = sphi 0, %s36
      %s39 = sphi 0, %s37
      %s51 = sphi 0, %s53
      %s54 = sphi 0, %s51
      %s55 = sphi 0, %s54
      %s71 = sphi 0, %s55
      %s79 = sphi 0, %s81
      %s82 = sphi 0, %s79
      %s83 = sphi 0, %s82
      %s99 = sphi 0, %s83
      %s105 = sphi 0, %s107
      %s108 = sphi 0, %s105
      %s109 = sphi 0, %s108
      %s125 = sphi 0, %s109
      %s129 = sphi 0, %s129
      %s131 = sphi 0, %s129
      %s132 = sphi 0, %s131
      %s146 = sphi 0, %s132
      %s150 = sphi 0, %s150
      %s152 = sphi 0, %s150
      %s153 = sphi 0, %s152
      %s167 = sphi 0, %s153
      %s171 = sphi 0, %s171
      %s173 = sphi 0, %s171
      %s174 = sphi 0, %s173
      %s188 = sphi 0, %s174
      %s194 = sphi 0, %s196
      %s197 = sphi 0, %s194
      %s198 = sphi 0, %s197
      %s214 = sphi 0, %s198
    $region4: #{tpu_custom_call.1} parent=1 // loop_header_branch
      %30 = sbr.rel (%p28) target = $region8
    $region5: #{tpu_custom_call.1} parent=1 // loop_body
      %s32 = ssub.s32 %s27, 1
      %s33 = ssub.s32 %s27, 2
      %s40 = sadd.s32 1, %s35
      %p41 = scmp.ge.s32.totalorder %s40, 2
      %s42 = scalar_select %p41, 0, %s40
      %s43 = sadd.s32 1, %s34
      %s44 = scalar_select %p41, %s43, %s34
      %p45 = scmp.ge.s32.totalorder %s44, 2
      %s46 = scalar_select %p45, 0, %s44
      %s47 = ssub.s32 %s34, %s46
      %s48 = ssub.s32 %s35, %s42
      %s49 = sor.u32 %s47, %s48
      %p50 = scmp.eq.s32.totalorder %s49, 0
      %s52 = sadd.s32 %s51, 1
      %s53 = scalar_select %p50, %s51, %s52
      %p56 = pneg %p50
      %p57 = scmp.eq.s32.totalorder %s27, 3
      %p58 = por %p56, %p57
      %p59 = scmp.ne.s32.totalorder %s51, %s54
      %p60 = scmp.eq.s32.totalorder %s27, 0
      %p61 = por %p59, %p60
      %p62 = scmp.ne.s32.totalorder %s51, %s54
      %p63 = scmp.eq.s32.totalorder %s32, 3
      %p64 = por %p62, %p63
      %p65 = scmp.ne.s32.totalorder %s54, %s55
      %p66 = scmp.eq.s32.totalorder %s32, 0
      %p67 = por %p65, %p66
      %p68 = scmp.ne.s32.totalorder %s54, %s55
      %p69 = scmp.eq.s32.totalorder %s33, 3
      %p70 = por %p68, %p69
      %p72 = scmp.ne.s32.totalorder %s55, %s71
      %p73 = scmp.eq.s32.totalorder %s33, 0
      %p74 = por %p72, %p73
      %s75 = ssub.s32 %s34, %s46
      %s76 = ssub.s32 %s35, %s42
      %s77 = sor.u32 %s75, %s76
      %p78 = scmp.eq.s32.totalorder %s77, 0
      %s80 = sadd.s32 %s79, 1
      %s81 = scalar_select %p78, %s79, %s80
      %p84 = pneg %p78
      %p85 = scmp.eq.s32.totalorder %s27, 3
      %p86 = por %p84, %p85
      %p87 = scmp.ne.s32.totalorder %s79, %s82
      %p88 = scmp.eq.s32.totalorder %s27, 0
      %p89 = por %p87, %p88
      %p90 = scmp.ne.s32.totalorder %s79, %s82
      %p91 = scmp.eq.s32.totalorder %s32, 3
      %p92 = por %p90, %p91
      %p93 = scmp.ne.s32.totalorder %s82, %s83
      %p94 = scmp.eq.s32.totalorder %s32, 0
      %p95 = por %p93, %p94
      %p96 = scmp.ne.s32.totalorder %s82, %s83
      %p97 = scmp.eq.s32.totalorder %s33, 3
      %p98 = por %p96, %p97
      %p100 = scmp.ne.s32.totalorder %s83, %s99
      %p101 = scmp.eq.s32.totalorder %s33, 0
      %p102 = por %p100, %p101
      %s103 = ssub.s32 %s35, %s42
      %p104 = scmp.eq.s32.totalorder %s103, 0
      %s106 = sadd.s32 %s105, 1
      %s107 = scalar_select %p104, %s105, %s106
      %p110 = pneg %p104
      %p111 = scmp.eq.s32.totalorder %s27, 3
      %p112 = por %p110, %p111
      %p113 = scmp.ne.s32.totalorder %s105, %s108
      %p114 = scmp.eq.s32.totalorder %s27, 0
      %p115 = por %p113, %p114
      %p116 = scmp.ne.s32.totalorder %s105, %s108
      %p117 = scmp.eq.s32.totalorder %s32, 3
      %p118 = por %p116, %p117
      %p119 = scmp.ne.s32.totalorder %s108, %s109
      %p120 = scmp.eq.s32.totalorder %s32, 0
      %p121 = por %p119, %p120
      %p122 = scmp.ne.s32.totalorder %s108, %s109
      %p123 = scmp.eq.s32.totalorder %s33, 3
      %p124 = por %p122, %p123
      %p126 = scmp.ne.s32.totalorder %s109, %s125
      %p127 = scmp.eq.s32.totalorder %s33, 0
      %p128 = por %p126, %p127
      %s130 = sadd.s32 %s129, 1
      %p133 = scmp.eq.s32.totalorder %s27, 3
      %p134 = scmp.ne.s32.totalorder %s129, %s131
      %p135 = scmp.eq.s32.totalorder %s27, 0
      %p136 = por %p134, %p135
      %p137 = scmp.ne.s32.totalorder %s129, %s131
      %p138 = scmp.eq.s32.totalorder %s32, 3
      %p139 = por %p137, %p138
      %p140 = scmp.ne.s32.totalorder %s131, %s132
      %p141 = scmp.eq.s32.totalorder %s32, 0
      %p142 = por %p140, %p141
      %p143 = scmp.ne.s32.totalorder %s131, %s132
      %p144 = scmp.eq.s32.totalorder %s33, 3
      %p145 = por %p143, %p144
      %p147 = scmp.ne.s32.totalorder %s132, %s146
      %p148 = scmp.eq.s32.totalorder %s33, 0
      %p149 = por %p147, %p148
      %s151 = sadd.s32 %s150, 1
      %p154 = scmp.eq.s32.totalorder %s27, 3
      %p155 = scmp.ne.s32.totalorder %s150, %s152
      %p156 = scmp.eq.s32.totalorder %s27, 0
      %p157 = por %p155, %p156
      %p158 = scmp.ne.s32.totalorder %s150, %s152
      %p159 = scmp.eq.s32.totalorder %s32, 3
      %p160 = por %p158, %p159
      %p161 = scmp.ne.s32.totalorder %s152, %s153
      %p162 = scmp.eq.s32.totalorder %s32, 0
      %p163 = por %p161, %p162
      %p164 = scmp.ne.s32.totalorder %s152, %s153
      %p165 = scmp.eq.s32.totalorder %s33, 3
      %p166 = por %p164, %p165
      %p168 = scmp.ne.s32.totalorder %s153, %s167
      %p169 = scmp.eq.s32.totalorder %s33, 0
      %p170 = por %p168, %p169
      %s172 = sadd.s32 %s171, 1
      %p175 = scmp.eq.s32.totalorder %s27, 3
      %p176 = scmp.ne.s32.totalorder %s171, %s173
      %p177 = scmp.eq.s32.totalorder %s27, 0
      %p178 = por %p176, %p177
      %p179 = scmp.ne.s32.totalorder %s171, %s173
      %p180 = scmp.eq.s32.totalorder %s32, 3
      %p181 = por %p179, %p180
      %p182 = scmp.ne.s32.totalorder %s173, %s174
      %p183 = scmp.eq.s32.totalorder %s32, 0
      %p184 = por %p182, %p183
      %p185 = scmp.ne.s32.totalorder %s173, %s174
      %p186 = scmp.eq.s32.totalorder %s33, 3
      %p187 = por %p185, %p186
      %p189 = scmp.ne.s32.totalorder %s174, %s188
      %p190 = scmp.eq.s32.totalorder %s33, 0
      %p191 = por %p189, %p190
      %s192 = ssub.s32 %s34, %s46
      %p193 = scmp.eq.s32.totalorder %s192, 0
      %s195 = sadd.s32 %s194, 1
      %s196 = scalar_select %p193, %s194, %s195
      %p199 = pneg %p193
      %p200 = scmp.eq.s32.totalorder %s27, 3
      %p201 = por %p199, %p200
      %p202 = scmp.ne.s32.totalorder %s194, %s197
      %p203 = scmp.eq.s32.totalorder %s27, 0
      %p204 = por %p202, %p203
      %p205 = scmp.ne.s32.totalorder %s194, %s197
      %p206 = scmp.eq.s32.totalorder %s32, 3
      %p207 = por %p205, %p206
      %p208 = scmp.ne.s32.totalorder %s197, %s198
      %p209 = scmp.eq.s32.totalorder %s32, 0
      %p210 = por %p208, %p209
      %p211 = scmp.ne.s32.totalorder %s197, %s198
      %p212 = scmp.eq.s32.totalorder %s33, 3
      %p213 = por %p211, %p212
      %p215 = scmp.ne.s32.totalorder %s198, %s214
      %p216 = scmp.eq.s32.totalorder %s33, 0
      %p217 = por %p215, %p216
      %p218 = scmp.le.s32.totalorder 1, %s27
      %p219 = scmp.lt.s32.totalorder %s27, 5
      %p220 = pnand %p218, %p219
      %p221 = pneg %p220
      // Predicated region
      $region9: #{tpu_custom_call.1} parent=5 // pred_check
        _
      $region10: #{tpu_custom_call.1} parent=5 // pred_check_branch
        %223 = sbr.rel (%p220) target = $region12
      $region11: #{tpu_custom_call.1} parent=5 // pred_region
        %s224 = ssub.s32 %s27, 1
        // Predicated region
        $region13: #{tpu_custom_call.1} parent=11 // pred_check
          %p225 = pneg %p142
        $region14: #{tpu_custom_call.1} parent=11 // pred_check_branch
          %227 = sbr.rel (%p225) target = $region16
        $region15: #{tpu_custom_call.1} parent=11 // pred_region
          _
        $region16: #{tpu_custom_call.1} parent=11 // pred_fallthru
          _
        // Predicated region
        $region17: #{tpu_custom_call.1} parent=11 // pred_check
          %p228 = pneg %p163
        $region18: #{tpu_custom_call.1} parent=11 // pred_check_branch
          %230 = sbr.rel (%p228) target = $region20
        $region19: #{tpu_custom_call.1} parent=11 // pred_region
          %s232 = ssub.s32 2048, 2048
          %233 = vsyncadd [#allocation12], %s232
          %s234 = sshll.u32 [#allocation11], 4
          %s235 = int_to_ptr.vmem [resolvable:$true] %s234
          %240 = dma.hbm_to_vmem [thread:$0]  %s5, 2048, %s235, [#allocation12], 128, 128, 8
        $region20: #{tpu_custom_call.1} parent=11 // pred_fallthru
          _
        // Predicated region
        $region21: #{tpu_custom_call.1} parent=11 // pred_check
          %p241 = pneg %p184
        $region22: #{tpu_custom_call.1} parent=11 // pred_check_branch
          %243 = sbr.rel (%p241) target = $region24
        $region23: #{tpu_custom_call.1} parent=11 // pred_region
          _
        $region24: #{tpu_custom_call.1} parent=11 // pred_fallthru
          _
      $region12: #{tpu_custom_call.1} parent=5 // pred_fallthru
        _
      %p244 = scmp.lt.s32.totalorder %s27, 4
      // Predicated region
      $region25: #{tpu_custom_call.1} parent=5 // pred_check
        %p245 = pneg %p244
      $region26: #{tpu_custom_call.1} parent=5 // pred_check_branch
        %247 = sbr.rel (%p245) target = $region28
      $region27: #{tpu_custom_call.1} parent=5 // pred_region
        // Predicated region
        $region29: #{tpu_custom_call.1} parent=27 // pred_check
          %p248 = pneg %p61
        $region30: #{tpu_custom_call.1} parent=27 // pred_check_branch
          %250 = sbr.rel (%p248) target = $region32
        $region31: #{tpu_custom_call.1} parent=27 // pred_region
          #allocation15 [shape = 'u32[6]{0}', space=smem, size = 0x18, scoped, tag = 'DMA stride descriptor']
          %s251 = sand.u32 %s51, 1
          %s252 = scalar_lea.sflag [#allocation6], %s251
          %s253 = sand.u32 %s51, 1
          %s254 = smul.addr %s253, 512
          %s255 = scalar_lea.vmem [#allocation5], %s254
          %s256 = smul.u32 16, %s34
          %s258 = ssub.s32 8192, 8192
          %259 = vsyncadd %s252, %s258
          %s260 = smul.addr %s256, 2
          %s261 = sadd.s32 %s35, %s260
          %s262 = smul.addr %s261, 128
          %s263 = scalar_lea.hbm %s1, %s262
          %s265 = sshll.u32 1, 14
          %s266 = sxor.u32 4294967295, %s265
          %s268 = sld [smem:[#allocation0]]
          %s269 = sadd.s32 2, %s268
          %s271 = sshll.u32 7, 26
          %s272 = sxor.u32 4294967295, %s271
          %s273 = sand.u32 0, %s272
          %s274 = sshll.u32 %s269, 26
          %s275 = sor.u32 %s273, %s274
          %s276 = sshll.u32 %s255, 4
          %s277 = int_to_ptr.vmem [resolvable:$true] %s276
          %283 = sst [smem:[#allocation15]] 8192
          %s284 = scalar_lea.smem [#allocation15], 1
          %285 = sst [smem:[%s284]] 2048
          %s286 = scalar_lea.smem [#allocation15], 2
          %287 = sst [smem:[%s286]] 16
          %s288 = scalar_lea.smem [#allocation15], 3
          %289 = sst [smem:[%s288]] 256
          %s290 = scalar_lea.smem [#allocation15], 4
          %291 = sst [smem:[%s290]] 128
          %s292 = scalar_lea.smem [#allocation15], 5
          %293 = sst [smem:[%s292]] 8
          %295 = dma.general %s263, 8192, %s277, %s252, [#allocation14], [#allocation15], %s275, 0
        $region32: #{tpu_custom_call.1} parent=27 // pred_fallthru
          _
        // Predicated region
        $region33: #{tpu_custom_call.1} parent=27 // pred_check
          %p296 = pneg %p89
        $region34: #{tpu_custom_call.1} parent=27 // pred_check_branch
          %298 = sbr.rel (%p296) target = $region36
        $region35: #{tpu_custom_call.1} parent=27 // pred_region
          %s299 = sand.u32 %s27, 1
          %s300 = scalar_lea.sflag [#allocation9], %s299
          %s301 = sand.u32 %s79, 1
          %s302 = smul.addr %s301, 128
          %s303 = scalar_lea.vmem [#allocation8], %s302
          %s304 = smul.u32 16, %s34
          %s306 = ssub.s32 2048, 2048
          %307 = vsyncadd %s300, %s306
          %s308 = smul.addr %s304, 2
          %s309 = sadd.s32 %s35, %s308
          %s310 = smul.addr %s309, 128
          %s311 = scalar_lea.hbm %s2, %s310
          %s312 = sshll.u32 %s303, 4
          %s313 = int_to_ptr.vmem [resolvable:$true] %s312
          %318 = dma.hbm_to_vmem [thread:$0]  %s311, 2048, %s313, %s300, 256, 128, 8
        $region36: #{tpu_custom_call.1} parent=27 // pred_fallthru
          _
        // Predicated region
        $region37: #{tpu_custom_call.1} parent=27 // pred_check
          %p319 = pneg %p115
        $region38: #{tpu_custom_call.1} parent=27 // pred_check_branch
          %321 = sbr.rel (%p319) target = $region40
        $region39: #{tpu_custom_call.1} parent=27 // pred_region
          %s322 = sand.u32 %s27, 1
          %s323 = scalar_lea.sflag [#allocation9], %s322
          %s324 = sand.u32 %s105, 1
          %s325 = smul.addr %s324, 128
          %s326 = scalar_lea.vmem [#allocation10], %s325
          %s327 = smul.u32 16, %s35
          %s329 = ssub.s32 2048, 2048
          %330 = vsyncadd %s323, %s329
          %s331 = smul.addr %s327, 128
          %s332 = scalar_lea.hbm %s3, %s331
          %s333 = sshll.u32 %s326, 4
          %s334 = int_to_ptr.vmem [resolvable:$true] %s333
          %339 = dma.hbm_to_vmem [thread:$0]  %s332, 2048, %s334, %s323, 128, 128, 8
        $region40: #{tpu_custom_call.1} parent=27 // pred_fallthru
          _
      $region28: #{tpu_custom_call.1} parent=5 // pred_fallthru
        _
      %p340 = scmp.le.s32.totalorder 1, %s27
      %p341 = scmp.lt.s32.totalorder %s27, 5
      %p342 = pnand %p340, %p341
      %p343 = pneg %p342
      // Predicated region
      $region41: #{tpu_custom_call.1} parent=5 // pred_check
        _
      $region42: #{tpu_custom_call.1} parent=5 // pred_check_branch
        %345 = sbr.rel (%p342) target = $region44
      $region43: #{tpu_custom_call.1} parent=5 // pred_region
        %s346 = ssub.s32 %s27, 1
        %s347 = sand.u32 %s54, 1
        %s348 = scalar_lea.sflag [#allocation6], %s347
        %s349 = sand.u32 %s54, 1
        %s350 = smul.addr %s349, 512
        %s351 = scalar_lea.vmem [#allocation5], %s350
        // Predicated region
        $region45: #{tpu_custom_call.1} parent=43 // pred_check
          %p352 = pneg %p67
        $region46: #{tpu_custom_call.1} parent=43 // pred_check_branch
          %354 = sbr.rel (%p352) target = $region48
        $region47: #{tpu_custom_call.1} parent=43 // pred_region
          %355 = dma.done %s348, 8192
        $region48: #{tpu_custom_call.1} parent=43 // pred_fallthru
          _
        %s356 = sand.u32 %s32, 1
        %s357 = scalar_lea.sflag [#allocation9], %s356
        %s358 = sand.u32 %s82, 1
        %s359 = smul.addr %s358, 128
        %s360 = scalar_lea.vmem [#allocation8], %s359
        // Predicated region
        $region49: #{tpu_custom_call.1} parent=43 // pred_check
          %p361 = pneg %p95
        $region50: #{tpu_custom_call.1} parent=43 // pred_check_branch
          %363 = sbr.rel (%p361) target = $region52
        $region51: #{tpu_custom_call.1} parent=43 // pred_region
          %364 = dma.done %s357, 2048
        $region52: #{tpu_custom_call.1} parent=43 // pred_fallthru
          _
        %s365 = sand.u32 %s32, 1
        %s366 = scalar_lea.sflag [#allocation9], %s365
        %s367 = sand.u32 %s108, 1
        %s368 = smul.addr %s367, 128
        %s369 = scalar_lea.vmem [#allocation10], %s368
        // Predicated region
        $region53: #{tpu_custom_call.1} parent=43 // pred_check
          %p370 = pneg %p121
        $region54: #{tpu_custom_call.1} parent=43 // pred_check_branch
          %372 = sbr.rel (%p370) target = $region56
        $region55: #{tpu_custom_call.1} parent=43 // pred_region
          %373 = dma.done %s366, 2048
        $region56: #{tpu_custom_call.1} parent=43 // pred_fallthru
          _
        // Predicated region
        $region57: #{tpu_custom_call.1} parent=43 // pred_check
          %p374 = pneg %p163
        $region58: #{tpu_custom_call.1} parent=43 // pred_check_branch
          %376 = sbr.rel (%p374) target = $region60
        $region59: #{tpu_custom_call.1} parent=43 // pred_region
          %377 = dma.done [#allocation12], 2048
        $region60: #{tpu_custom_call.1} parent=43 // pred_fallthru
          _
        %s378 = sand.u32 %s54, 1
        %s379 = scalar_lea.sflag [#allocation6], %s378
        %s380 = sand.u32 %s54, 1
        %s381 = smul.addr %s380, 512
        %s382 = scalar_lea.vmem [#allocation5], %s381
        %p383 = pneg %p67
        %p384 = pneg %p64
        %s385 = sand.u32 %s32, 1
        %s386 = scalar_lea.sflag [#allocation9], %s385
        %s387 = sand.u32 %s82, 1
        %s388 = smul.addr %s387, 128
        %s389 = scalar_lea.vmem [#allocation8], %s388
        %p390 = pneg %p95
        %p391 = pneg %p92
        %s392 = sand.u32 %s32, 1
        %s393 = scalar_lea.sflag [#allocation9], %s392
        %s394 = sand.u32 %s108, 1
        %s395 = smul.addr %s394, 128
        %s396 = scalar_lea.vmem [#allocation10], %s395
        %p397 = pneg %p121
        %p398 = pneg %p118
        %p399 = pneg %p142
        %p400 = pneg %p139
        %p401 = pneg %p163
        %p402 = pneg %p160
        %p403 = pneg %p184
        %p404 = pneg %p181
        %p405 = pneg %p210
        %p406 = pneg %p207
        %s407 = sand.u32 %s197, 1
        %s408 = scalar_lea.sflag [#allocation7], %s407
        %s409 = sand.u32 %s197, 1
        %s410 = smul.addr %s409, 128
        %s411 = scalar_lea.vmem [#allocation13], %s410
        %s412 = smul.u32 16, %s36
        %s413 = smul.u32 16, %s36
        %s414 = smul.u32 16, %s37
        %s415 = smul.u32 16, %s36
        %p416 = scmp.eq.s32.totalorder %s37, 0
        // Predicated region
        $region61: #{tpu_custom_call.1} parent=43 // pred_check
          %p417 = pneg %p416
        $region62: #{tpu_custom_call.1} parent=43 // pred_check_branch
          %419 = sbr.rel (%p417) target = $region64
        $region63: #{tpu_custom_call.1} parent=43 // pred_region
          %420 = vst [vmem:[#allocation2] sm:$0xff] 0.0
          %421 = vst [vmem:[#allocation2 + $0x8] sm:$0xff] 0.0
          %422 = vst [vmem:[#allocation2 + $0x10] sm:$0xff] 0.0
          %423 = vst [vmem:[#allocation2 + $0x18] sm:$0xff] 0.0
          %424 = vst [vmem:[#allocation2 + $0x20] sm:$0xff] 0.0
          %425 = vst [vmem:[#allocation2 + $0x28] sm:$0xff] 0.0
          %426 = vst [vmem:[#allocation2 + $0x30] sm:$0xff] 0.0
          %427 = vst [vmem:[#allocation2 + $0x38] sm:$0xff] 0.0
          %428 = vst [vmem:[#allocation2 + $0x40] sm:$0xff] 0.0
          %429 = vst [vmem:[#allocation2 + $0x48] sm:$0xff] 0.0
          %430 = vst [vmem:[#allocation2 + $0x50] sm:$0xff] 0.0
          %431 = vst [vmem:[#allocation2 + $0x58] sm:$0xff] 0.0
          %432 = vst [vmem:[#allocation2 + $0x60] sm:$0xff] 0.0
          %433 = vst [vmem:[#allocation2 + $0x68] sm:$0xff] 0.0
          %434 = vst [vmem:[#allocation2 + $0x70] sm:$0xff] 0.0
          %435 = vst [vmem:[#allocation2 + $0x78] sm:$0xff] 0.0
        $region64: #{tpu_custom_call.1} parent=43 // pred_fallthru
          _
        %s436 = sld [smem:[#allocation4]]
        %v437 = vld [vmem:[%s351] sm:$0xff]
        %v438 = vld [vmem:[%s351 + $0x8] sm:$0xff]
        %v439 = vld [vmem:[%s351 + $0x10] sm:$0xff]
        %v440 = vld [vmem:[%s351 + $0x18] sm:$0xff]
        %v441 = vld [vmem:[%s351 + $0x20] sm:$0xff]
        %v442 = vld [vmem:[%s351 + $0x28] sm:$0xff]
        %v443 = vld [vmem:[%s351 + $0x30] sm:$0xff]
        %v444 = vld [vmem:[%s351 + $0x38] sm:$0xff]
        %v445 = vld [vmem:[%s351 + $0x40] sm:$0xff]
        %v446 = vld [vmem:[%s351 + $0x48] sm:$0xff]
        %v447 = vld [vmem:[%s351 + $0x50] sm:$0xff]
        %v448 = vld [vmem:[%s351 + $0x58] sm:$0xff]
        %v449 = vld [vmem:[%s351 + $0x60] sm:$0xff]
        %v450 = vld [vmem:[%s351 + $0x68] sm:$0xff]
        %v451 = vld [vmem:[%s351 + $0x70] sm:$0xff]
        %v452 = vld [vmem:[%s351 + $0x78] sm:$0xff]
        %v453 = vstv %s436
        %v454 = vmul.f32 %v453, %v437
        %v455 = vmul.f32 %v453, %v438
        %v456 = vmul.f32 %v453, %v439
        %v457 = vmul.f32 %v453, %v440
        %v458 = vmul.f32 %v453, %v441
        %v459 = vmul.f32 %v453, %v442
        %v460 = vmul.f32 %v453, %v443
        %v461 = vmul.f32 %v453, %v444
        %v462 = vmul.f32 %v453, %v445
        %v463 = vmul.f32 %v453, %v446
        %v464 = vmul.f32 %v453, %v447
        %v465 = vmul.f32 %v453, %v448
        %v466 = vmul.f32 %v453, %v449
        %v467 = vmul.f32 %v453, %v450
        %v468 = vmul.f32 %v453, %v451
        %v469 = vmul.f32 %v453, %v452
        %s470 = sld [smem:[#allocation4 + $0x1]]
        %s471 = scalar_lea.vmem %s351, 128 [#allocation5]
        %v472 = vld [vmem:[%s471] sm:$0xff]
        %v473 = vld [vmem:[%s471 + $0x8] sm:$0xff]
        %v474 = vld [vmem:[%s471 + $0x10] sm:$0xff]
        %v475 = vld [vmem:[%s471 + $0x18] sm:$0xff]
        %v476 = vld [vmem:[%s471 + $0x20] sm:$0xff]
        %v477 = vld [vmem:[%s471 + $0x28] sm:$0xff]
        %v478 = vld [vmem:[%s471 + $0x30] sm:$0xff]
        %v479 = vld [vmem:[%s471 + $0x38] sm:$0xff]
        %v480 = vld [vmem:[%s471 + $0x40] sm:$0xff]
        %v481 = vld [vmem:[%s471 + $0x48] sm:$0xff]
        %v482 = vld [vmem:[%s471 + $0x50] sm:$0xff]
        %v483 = vld [vmem:[%s471 + $0x58] sm:$0xff]
        %v484 = vld [vmem:[%s471 + $0x60] sm:$0xff]
        %v485 = vld [vmem:[%s471 + $0x68] sm:$0xff]
        %v486 = vld [vmem:[%s471 + $0x70] sm:$0xff]
        %v487 = vld [vmem:[%s471 + $0x78] sm:$0xff]
        %v488 = vstv %s470
        %v489 = vmul.f32 %v488, %v472
        %v490 = vmul.f32 %v488, %v473
        %v491 = vmul.f32 %v488, %v474
        %v492 = vmul.f32 %v488, %v475
        %v493 = vmul.f32 %v488, %v476
        %v494 = vmul.f32 %v488, %v477
        %v495 = vmul.f32 %v488, %v478
        %v496 = vmul.f32 %v488, %v479
        %v497 = vmul.f32 %v488, %v480
        %v498 = vmul.f32 %v488, %v481
        %v499 = vmul.f32 %v488, %v482
        %v500 = vmul.f32 %v488, %v483
        %v501 = vmul.f32 %v488, %v484
        %v502 = vmul.f32 %v488, %v485
        %v503 = vmul.f32 %v488, %v486
        %v504 = vmul.f32 %v488, %v487
        %v505 = vadd.f32 %v454, %v489
        %v506 = vadd.f32 %v455, %v490
        %v507 = vadd.f32 %v456, %v491
        %v508 = vadd.f32 %v457, %v492
        %v509 = vadd.f32 %v458, %v493
        %v510 = vadd.f32 %v459, %v494
        %v511 = vadd.f32 %v460, %v495
        %v512 = vadd.f32 %v461, %v496
        %v513 = vadd.f32 %v462, %v497
        %v514 = vadd.f32 %v463, %v498
        %v515 = vadd.f32 %v464, %v499
        %v516 = vadd.f32 %v465, %v500
        %v517 = vadd.f32 %v466, %v501
        %v518 = vadd.f32 %v467, %v502
        %v519 = vadd.f32 %v468, %v503
        %v520 = vadd.f32 %v469, %v504
        %s521 = sld [smem:[#allocation4 + $0x2]]
        %s522 = scalar_lea.vmem %s351, 256 [#allocation5]
        %v523 = vld [vmem:[%s522] sm:$0xff]
        %v524 = vld [vmem:[%s522 + $0x8] sm:$0xff]
        %v525 = vld [vmem:[%s522 + $0x10] sm:$0xff]
        %v526 = vld [vmem:[%s522 + $0x18] sm:$0xff]
        %v527 = vld [vmem:[%s522 + $0x20] sm:$0xff]
        %v528 = vld [vmem:[%s522 + $0x28] sm:$0xff]
        %v529 = vld [vmem:[%s522 + $0x30] sm:$0xff]
        %v530 = vld [vmem:[%s522 + $0x38] sm:$0xff]
        %v531 = vld [vmem:[%s522 + $0x40] sm:$0xff]
        %v532 = vld [vmem:[%s522 + $0x48] sm:$0xff]
        %v533 = vld [vmem:[%s522 + $0x50] sm:$0xff]
        %v534 = vld [vmem:[%s522 + $0x58] sm:$0xff]
        %v535 = vld [vmem:[%s522 + $0x60] sm:$0xff]
        %v536 = vld [vmem:[%s522 + $0x68] sm:$0xff]
        %v537 = vld [vmem:[%s522 + $0x70] sm:$0xff]
        %v538 = vld [vmem:[%s522 + $0x78] sm:$0xff]
        %v539 = vstv %s521
        %v540 = vmul.f32 %v539, %v523
        %v541 = vmul.f32 %v539, %v524
        %v542 = vmul.f32 %v539, %v525
        %v543 = vmul.f32 %v539, %v526
        %v544 = vmul.f32 %v539, %v527
        %v545 = vmul.f32 %v539, %v528
        %v546 = vmul.f32 %v539, %v529
        %v547 = vmul.f32 %v539, %v530
        %v548 = vmul.f32 %v539, %v531
        %v549 = vmul.f32 %v539, %v532
        %v550 = vmul.f32 %v539, %v533
        %v551 = vmul.f32 %v539, %v534
        %v552 = vmul.f32 %v539, %v535
        %v553 = vmul.f32 %v539, %v536
        %v554 = vmul.f32 %v539, %v537
        %v555 = vmul.f32 %v539, %v538
        %v556 = vadd.f32 %v505, %v540
        %v557 = vadd.f32 %v506, %v541
        %v558 = vadd.f32 %v507, %v542
        %v559 = vadd.f32 %v508, %v543
        %v560 = vadd.f32 %v509, %v544
        %v561 = vadd.f32 %v510, %v545
        %v562 = vadd.f32 %v511, %v546
        %v563 = vadd.f32 %v512, %v547
        %v564 = vadd.f32 %v513, %v548
        %v565 = vadd.f32 %v514, %v549
        %v566 = vadd.f32 %v515, %v550
        %v567 = vadd.f32 %v516, %v551
        %v568 = vadd.f32 %v517, %v552
        %v569 = vadd.f32 %v518, %v553
        %v570 = vadd.f32 %v519, %v554
        %v571 = vadd.f32 %v520, %v555
        %s572 = sld [smem:[#allocation4 + $0x3]]
        %s573 = scalar_lea.vmem %s351, 384 [#allocation5]
        %v574 = vld [vmem:[%s573] sm:$0xff]
        %v575 = vld [vmem:[%s573 + $0x8] sm:$0xff]
        %v576 = vld [vmem:[%s573 + $0x10] sm:$0xff]
        %v577 = vld [vmem:[%s573 + $0x18] sm:$0xff]
        %v578 = vld [vmem:[%s573 + $0x20] sm:$0xff]
        %v579 = vld [vmem:[%s573 + $0x28] sm:$0xff]
        %v580 = vld [vmem:[%s573 + $0x30] sm:$0xff]
        %v581 = vld [vmem:[%s573 + $0x38] sm:$0xff]
        %v582 = vld [vmem:[%s573 + $0x40] sm:$0xff]
        %v583 = vld [vmem:[%s573 + $0x48] sm:$0xff]
        %v584 = vld [vmem:[%s573 + $0x50] sm:$0xff]
        %v585 = vld [vmem:[%s573 + $0x58] sm:$0xff]
        %v586 = vld [vmem:[%s573 + $0x60] sm:$0xff]
        %v587 = vld [vmem:[%s573 + $0x68] sm:$0xff]
        %v588 = vld [vmem:[%s573 + $0x70] sm:$0xff]
        %v589 = vld [vmem:[%s573 + $0x78] sm:$0xff]
        %v590 = vstv %s572
        %v591 = vmul.f32 %v590, %v574
        %v592 = vmul.f32 %v590, %v575
        %v593 = vmul.f32 %v590, %v576
        %v594 = vmul.f32 %v590, %v577
        %v595 = vmul.f32 %v590, %v578
        %v596 = vmul.f32 %v590, %v579
        %v597 = vmul.f32 %v590, %v580
        %v598 = vmul.f32 %v590, %v581
        %v599 = vmul.f32 %v590, %v582
        %v600 = vmul.f32 %v590, %v583
        %v601 = vmul.f32 %v590, %v584
        %v602 = vmul.f32 %v590, %v585
        %v603 = vmul.f32 %v590, %v586
        %v604 = vmul.f32 %v590, %v587
        %v605 = vmul.f32 %v590, %v588
        %v606 = vmul.f32 %v590, %v589
        %v607 = vadd.f32 %v556, %v591
        %v608 = vadd.f32 %v557, %v592
        %v609 = vadd.f32 %v558, %v593
        %v610 = vadd.f32 %v559, %v594
        %v611 = vadd.f32 %v560, %v595
        %v612 = vadd.f32 %v561, %v596
        %v613 = vadd.f32 %v562, %v597
        %v614 = vadd.f32 %v563, %v598
        %v615 = vadd.f32 %v564, %v599
        %v616 = vadd.f32 %v565, %v600
        %v617 = vadd.f32 %v566, %v601
        %v618 = vadd.f32 %v567, %v602
        %v619 = vadd.f32 %v568, %v603
        %v620 = vadd.f32 %v569, %v604
        %v621 = vadd.f32 %v570, %v605
        %v622 = vadd.f32 %v571, %v606
        %v623 = vld [vmem:[%s360] sm:$0xff]
        %v624 = vld [vmem:[%s360 + $0x8] sm:$0xff]
        %v625 = vld [vmem:[%s360 + $0x10] sm:$0xff]
        %v626 = vld [vmem:[%s360 + $0x18] sm:$0xff]
        %v627 = vld [vmem:[%s360 + $0x20] sm:$0xff]
        %v628 = vld [vmem:[%s360 + $0x28] sm:$0xff]
        %v629 = vld [vmem:[%s360 + $0x30] sm:$0xff]
        %v630 = vld [vmem:[%s360 + $0x38] sm:$0xff]
        %v631 = vld [vmem:[%s360 + $0x40] sm:$0xff]
        %v632 = vld [vmem:[%s360 + $0x48] sm:$0xff]
        %v633 = vld [vmem:[%s360 + $0x50] sm:$0xff]
        %v634 = vld [vmem:[%s360 + $0x58] sm:$0xff]
        %v635 = vld [vmem:[%s360 + $0x60] sm:$0xff]
        %v636 = vld [vmem:[%s360 + $0x68] sm:$0xff]
        %v637 = vld [vmem:[%s360 + $0x70] sm:$0xff]
        %v638 = vld [vmem:[%s360 + $0x78] sm:$0xff]
        %v639 = vmul.f32 %v607, %v623
        %v640 = vmul.f32 %v608, %v624
        %v641 = vmul.f32 %v609, %v625
        %v642 = vmul.f32 %v610, %v626
        %v643 = vmul.f32 %v611, %v627
        %v644 = vmul.f32 %v612, %v628
        %v645 = vmul.f32 %v613, %v629
        %v646 = vmul.f32 %v614, %v630
        %v647 = vmul.f32 %v615, %v631
        %v648 = vmul.f32 %v616, %v632
        %v649 = vmul.f32 %v617, %v633
        %v650 = vmul.f32 %v618, %v634
        %v651 = vmul.f32 %v619, %v635
        %v652 = vmul.f32 %v620, %v636
        %v653 = vmul.f32 %v621, %v637
        %v654 = vmul.f32 %v622, %v638
        %v655 = vld [vmem:[#allocation2] sm:$0xff]
        %v656 = vld [vmem:[#allocation2 + $0x8] sm:$0xff]
        %v657 = vld [vmem:[#allocation2 + $0x10] sm:$0xff]
        %v658 = vld [vmem:[#allocation2 + $0x18] sm:$0xff]
        %v659 = vld [vmem:[#allocation2 + $0x20] sm:$0xff]
        %v660 = vld [vmem:[#allocation2 + $0x28] sm:$0xff]
        %v661 = vld [vmem:[#allocation2 + $0x30] sm:$0xff]
        %v662 = vld [vmem:[#allocation2 + $0x38] sm:$0xff]
        %v663 = vld [vmem:[#allocation2 + $0x40] sm:$0xff]
        %v664 = vld [vmem:[#allocation2 + $0x48] sm:$0xff]
        %v665 = vld [vmem:[#allocation2 + $0x50] sm:$0xff]
        %v666 = vld [vmem:[#allocation2 + $0x58] sm:$0xff]
        %v667 = vld [vmem:[#allocation2 + $0x60] sm:$0xff]
        %v668 = vld [vmem:[#allocation2 + $0x68] sm:$0xff]
        %v669 = vld [vmem:[#allocation2 + $0x70] sm:$0xff]
        %v670 = vld [vmem:[#allocation2 + $0x78] sm:$0xff]
        %v671 = vld [vmem:[%s369] sm:$0xff]
        %v672 = vld [vmem:[%s369 + $0x8] sm:$0xff]
        %v673 = vld [vmem:[%s369 + $0x10] sm:$0xff]
        %v674 = vld [vmem:[%s369 + $0x18] sm:$0xff]
        %v675 = vld [vmem:[%s369 + $0x20] sm:$0xff]
        %v676 = vld [vmem:[%s369 + $0x28] sm:$0xff]
        %v677 = vld [vmem:[%s369 + $0x30] sm:$0xff]
        %v678 = vld [vmem:[%s369 + $0x38] sm:$0xff]
        %v679 = vld [vmem:[%s369 + $0x40] sm:$0xff]
        %v680 = vld [vmem:[%s369 + $0x48] sm:$0xff]
        %v681 = vld [vmem:[%s369 + $0x50] sm:$0xff]
        %v682 = vld [vmem:[%s369 + $0x58] sm:$0xff]
        %v683 = vld [vmem:[%s369 + $0x60] sm:$0xff]
        %v684 = vld [vmem:[%s369 + $0x68] sm:$0xff]
        %v685 = vld [vmem:[%s369 + $0x70] sm:$0xff]
        %v686 = vld [vmem:[%s369 + $0x78] sm:$0xff]
        %687 = vmatprep.subr.mxu0 0.0
        %688 = vmatpush1.msra.mxu0 %v671
        %689 = vmatprep.subr.mxu0 0.0
        %690 = vmatpush1.msra.mxu0 %v672
        %691 = vmatprep.subr.mxu0 0.0
        %692 = vmatpush1.msra.mxu0 %v673
        %693 = vmatprep.subr.mxu0 0.0
        %694 = vmatpush1.msra.mxu0 %v674
        %695 = vmatprep.subr.mxu0 0.0
        %696 = vmatpush1.msra.mxu0 %v675
        %697 = vmatprep.subr.mxu0 0.0
        %698 = vmatpush1.msra.mxu0 %v676
        %699 = vmatprep.subr.mxu0 0.0
        %700 = vmatpush1.msra.mxu0 %v677
        %701 = vmatprep.subr.mxu0 0.0
        %702 = vmatpush1.msra.mxu0 %v678
        %703 = vmatprep.subr.mxu0 0.0
        %704 = vmatpush1.msra.mxu0 %v679
        %705 = vmatprep.subr.mxu0 0.0
        %706 = vmatpush1.msra.mxu0 %v680
        %707 = vmatprep.subr.mxu0 0.0
        %708 = vmatpush1.msra.mxu0 %v681
        %709 = vmatprep.subr.mxu0 0.0
        %710 = vmatpush1.msra.mxu0 %v682
        %711 = vmatprep.subr.mxu0 0.0
        %712 = vmatpush1.msra.mxu0 %v683
        %713 = vmatprep.subr.mxu0 0.0
        %714 = vmatpush1.msra.mxu0 %v684
        %715 = vmatprep.subr.mxu0 0.0
        %716 = vmatpush1.msra.mxu0 %v685
        %717 = vmatprep.subr.mxu0 0.0
        %718 = vmatpush1.msra.mxu0 %v686
        %719 = vmatprep.subr.mxu0 0.0
        %720 = vmatpush1.msra.mxu0 0.0
        %721 = vmatprep.subr.mxu0 0.0
        %722 = vmatpush1.msra.mxu0 0.0
        %723 = vmatprep.subr.mxu0 0.0
        %724 = vmatpush1.msra.mxu0 0.0
        %725 = vmatprep.subr.mxu0 0.0
        %726 = vmatpush1.msra.mxu0 0.0
        %727 = vmatprep.subr.mxu0 0.0
        %728 = vmatpush1.msra.mxu0 0.0
        %729 = vmatprep.subr.mxu0 0.0
        %730 = vmatpush1.msra.mxu0 0.0
        %731 = vmatprep.subr.mxu0 0.0
        %732 = vmatpush1.msra.mxu0 0.0
        %733 = vmatprep.subr.mxu0 0.0
        %734 = vmatpush1.msra.mxu0 0.0
        %735 = vmatprep.subr.mxu0 0.0
        %736 = vmatpush1.msra.mxu0 0.0
        %737 = vmatprep.subr.mxu0 0.0
        %738 = vmatpush1.msra.mxu0 0.0
        %739 = vmatprep.subr.mxu0 0.0
        %740 = vmatpush1.msra.mxu0 0.0
        %741 = vmatprep.subr.mxu0 0.0
        %742 = vmatpush1.msra.mxu0 0.0
        %743 = vmatprep.subr.mxu0 0.0
        %744 = vmatpush1.msra.mxu0 0.0
        %745 = vmatprep.subr.mxu0 0.0
        %746 = vmatpush1.msra.mxu0 0.0
        %747 = vmatprep.subr.mxu0 0.0
        %748 = vmatpush1.msra.mxu0 0.0
        %749 = vmatprep.subr.mxu0 0.0
        %750 = vmatpush1.msra.mxu0 0.0
        %751 = vmatprep.mubr.f32.mxu0 0.0
        %752 = vmatmul.mubr.f32.gmra.mrb[0].mxu0 %v639
        %v753 = vpop.f32.mrb[0].mxu0
        %v754 = vadd.f32 0.0, %v753
        %v755 = vpop.f32.mrb[0].mxu0
        %756 = vmatprep.mubr.f32.mxu0 0.0
        %757 = vmatmul.mubr.f32.gmra.mrb[0].mxu0 %v640
        %v758 = vpop.f32.mrb[0].mxu0
        %v759 = vadd.f32 0.0, %v758
        %v760 = vpop.f32.mrb[0].mxu0
        %761 = vmatprep.mubr.f32.mxu0 0.0
        %762 = vmatmul.mubr.f32.gmra.mrb[0].mxu0 %v641
        %v763 = vpop.f32.mrb[0].mxu0
        %v764 = vadd.f32 0.0, %v763
        %v765 = vpop.f32.mrb[0].mxu0
        %766 = vmatprep.mubr.f32.mxu0 0.0
        %767 = vmatmul.mubr.f32.gmra.mrb[0].mxu0 %v642
        %v768 = vpop.f32.mrb[0].mxu0
        %v769 = vadd.f32 0.0, %v768
        %v770 = vpop.f32.mrb[0].mxu0
        %771 = vmatprep.mubr.f32.mxu0 0.0
        %772 = vmatmul.mubr.f32.gmra.mrb[0].mxu0 %v643
        %v773 = vpop.f32.mrb[0].mxu0
        %v774 = vadd.f32 0.0, %v773
        %v775 = vpop.f32.mrb[0].mxu0
        %776 = vmatprep.mubr.f32.mxu0 0.0
        %777 = vmatmul.mubr.f32.gmra.mrb[0].mxu0 %v644
        %v778 = vpop.f32.mrb[0].mxu0
        %v779 = vadd.f32 0.0, %v778
        %v780 = vpop.f32.mrb[0].mxu0
        %781 = vmatprep.mubr.f32.mxu0 0.0
        %782 = vmatmul.mubr.f32.gmra.mrb[0].mxu0 %v645
        %v783 = vpop.f32.mrb[0].mxu0
        %v784 = vadd.f32 0.0, %v783
        %v785 = vpop.f32.mrb[0].mxu0
        %786 = vmatprep.mubr.f32.mxu0 0.0
        %787 = vmatmul.mubr.f32.gmra.mrb[0].mxu0 %v646
        %v788 = vpop.f32.mrb[0].mxu0
        %v789 = vadd.f32 0.0, %v788
        %v790 = vpop.f32.mrb[0].mxu0
        %791 = vmatprep.mubr.f32.mxu0 0.0
        %792 = vmatmul.mubr.f32.gmra.mrb[0].mxu0 %v647
        %v793 = vpop.f32.mrb[0].mxu0
        %v794 = vadd.f32 0.0, %v793
        %v795 = vpop.f32.mrb[0].mxu0
        %796 = vmatprep.mubr.f32.mxu0 0.0
        %797 = vmatmul.mubr.f32.gmra.mrb[0].mxu0 %v648
        %v798 = vpop.f32.mrb[0].mxu0
        %v799 = vadd.f32 0.0, %v798
        %v800 = vpop.f32.mrb[0].mxu0
        %801 = vmatprep.mubr.f32.mxu0 0.0
        %802 = vmatmul.mubr.f32.gmra.mrb[0].mxu0 %v649
        %v803 = vpop.f32.mrb[0].mxu0
        %v804 = vadd.f32 0.0, %v803
        %v805 = vpop.f32.mrb[0].mxu0
        %806 = vmatprep.mubr.f32.mxu0 0.0
        %807 = vmatmul.mubr.f32.gmra.mrb[0].mxu0 %v650
        %v808 = vpop.f32.mrb[0].mxu0
        %v809 = vadd.f32 0.0, %v808
        %v810 = vpop.f32.mrb[0].mxu0
        %811 = vmatprep.mubr.f32.mxu0 0.0
        %812 = vmatmul.mubr.f32.gmra.mrb[0].mxu0 %v651
        %v813 = vpop.f32.mrb[0].mxu0
        %v814 = vadd.f32 0.0, %v813
        %v815 = vpop.f32.mrb[0].mxu0
        %816 = vmatprep.mubr.f32.mxu0 0.0
        %817 = vmatmul.mubr.f32.gmra.mrb[0].mxu0 %v652
        %v818 = vpop.f32.mrb[0].mxu0
        %v819 = vadd.f32 0.0, %v818
        %v820 = vpop.f32.mrb[0].mxu0
        %821 = vmatprep.mubr.f32.mxu0 0.0
        %822 = vmatmul.mubr.f32.gmra.mrb[0].mxu0 %v653
        %v823 = vpop.f32.mrb[0].mxu0
        %v824 = vadd.f32 0.0, %v823
        %v825 = vpop.f32.mrb[0].mxu0
        %826 = vmatprep.mubr.f32.mxu0 0.0
        %827 = vmatmul.mubr.f32.gmra.mrb[0].mxu0 %v654
        %v828 = vpop.f32.mrb[0].mxu0
        %v829 = vadd.f32 0.0, %v828
        %v830 = vpop.f32.mrb[0].mxu0
        %831 = vdwg.mxu0
        %v832 = vadd.f32 %v655, %v754
        %v833 = vadd.f32 %v656, %v759
        %v834 = vadd.f32 %v657, %v764
        %v835 = vadd.f32 %v658, %v769
        %v836 = vadd.f32 %v659, %v774
        %v837 = vadd.f32 %v660, %v779
        %v838 = vadd.f32 %v661, %v784
        %v839 = vadd.f32 %v662, %v789
        %v840 = vadd.f32 %v663, %v794
        %v841 = vadd.f32 %v664, %v799
        %v842 = vadd.f32 %v665, %v804
        %v843 = vadd.f32 %v666, %v809
        %v844 = vadd.f32 %v667, %v814
        %v845 = vadd.f32 %v668, %v819
        %v846 = vadd.f32 %v669, %v824
        %v847 = vadd.f32 %v670, %v829
        %848 = vst [vmem:[#allocation2] sm:$0xff] %v832
        %849 = vst [vmem:[#allocation2 + $0x8] sm:$0xff] %v833
        %850 = vst [vmem:[#allocation2 + $0x10] sm:$0xff] %v834
        %851 = vst [vmem:[#allocation2 + $0x18] sm:$0xff] %v835
        %852 = vst [vmem:[#allocation2 + $0x20] sm:$0xff] %v836
        %853 = vst [vmem:[#allocation2 + $0x28] sm:$0xff] %v837
        %854 = vst [vmem:[#allocation2 + $0x30] sm:$0xff] %v838
        %855 = vst [vmem:[#allocation2 + $0x38] sm:$0xff] %v839
        %856 = vst [vmem:[#allocation2 + $0x40] sm:$0xff] %v840
        %857 = vst [vmem:[#allocation2 + $0x48] sm:$0xff] %v841
        %858 = vst [vmem:[#allocation2 + $0x50] sm:$0xff] %v842
        %859 = vst [vmem:[#allocation2 + $0x58] sm:$0xff] %v843
        %860 = vst [vmem:[#allocation2 + $0x60] sm:$0xff] %v844
        %861 = vst [vmem:[#allocation2 + $0x68] sm:$0xff] %v845
        %862 = vst [vmem:[#allocation2 + $0x70] sm:$0xff] %v846
        %863 = vst [vmem:[#allocation2 + $0x78] sm:$0xff] %v847
        %p864 = scmp.eq.s32.totalorder %s37, 1
        // Predicated region
        $region65: #{tpu_custom_call.1} parent=43 // pred_check
          %p865 = pneg %p864
        $region66: #{tpu_custom_call.1} parent=43 // pred_check_branch
          %867 = sbr.rel (%p865) target = $region68
        $region67: #{tpu_custom_call.1} parent=43 // pred_region
          %v868 = vld [vmem:[#allocation2] sm:$0xff]
          %v869 = vld [vmem:[#allocation2 + $0x8] sm:$0xff]
          %v870 = vld [vmem:[#allocation2 + $0x10] sm:$0xff]
          %v871 = vld [vmem:[#allocation2 + $0x18] sm:$0xff]
          %v872 = vld [vmem:[#allocation2 + $0x20] sm:$0xff]
          %v873 = vld [vmem:[#allocation2 + $0x28] sm:$0xff]
          %v874 = vld [vmem:[#allocation2 + $0x30] sm:$0xff]
          %v875 = vld [vmem:[#allocation2 + $0x38] sm:$0xff]
          %v876 = vld [vmem:[#allocation2 + $0x40] sm:$0xff]
          %v877 = vld [vmem:[#allocation2 + $0x48] sm:$0xff]
          %v878 = vld [vmem:[#allocation2 + $0x50] sm:$0xff]
          %v879 = vld [vmem:[#allocation2 + $0x58] sm:$0xff]
          %v880 = vld [vmem:[#allocation2 + $0x60] sm:$0xff]
          %v881 = vld [vmem:[#allocation2 + $0x68] sm:$0xff]
          %v882 = vld [vmem:[#allocation2 + $0x70] sm:$0xff]
          %v883 = vld [vmem:[#allocation2 + $0x78] sm:$0xff]
          %v884 = vld [vmem:[%s4] sm:$0x1]
          %vm885 = vcmp.ge.f32.partialorder %v868, 0.0
          %vm886 = vcmp.ge.f32.partialorder %v869, 0.0
          %vm887 = vcmp.ge.f32.partialorder %v870, 0.0
          %vm888 = vcmp.ge.f32.partialorder %v871, 0.0
          %vm889 = vcmp.ge.f32.partialorder %v872, 0.0
          %vm890 = vcmp.ge.f32.partialorder %v873, 0.0
          %vm891 = vcmp.ge.f32.partialorder %v874, 0.0
          %vm892 = vcmp.ge.f32.partialorder %v875, 0.0
          %vm893 = vcmp.ge.f32.partialorder %v876, 0.0
          %vm894 = vcmp.ge.f32.partialorder %v877, 0.0
          %vm895 = vcmp.ge.f32.partialorder %v878, 0.0
          %vm896 = vcmp.ge.f32.partialorder %v879, 0.0
          %vm897 = vcmp.ge.f32.partialorder %v880, 0.0
          %vm898 = vcmp.ge.f32.partialorder %v881, 0.0
          %vm899 = vcmp.ge.f32.partialorder %v882, 0.0
          %vm900 = vcmp.ge.f32.partialorder %v883, 0.0
          %v902 = vlaneseq
          %v903 = vshrl.u32 %v902, 7
          %v904 = vsub.s32 0, %v903
          %v905 = vrot.slane %v884, %v904
          %v907 = vmul.f32 %v905, %v868
          %v908 = vmul.f32 %v905, %v869
          %v909 = vmul.f32 %v905, %v870
          %v910 = vmul.f32 %v905, %v871
          %v911 = vmul.f32 %v905, %v872
          %v912 = vmul.f32 %v905, %v873
          %v913 = vmul.f32 %v905, %v874
          %v914 = vmul.f32 %v905, %v875
          %v915 = vmul.f32 %v905, %v876
          %v916 = vmul.f32 %v905, %v877
          %v917 = vmul.f32 %v905, %v878
          %v918 = vmul.f32 %v905, %v879
          %v919 = vmul.f32 %v905, %v880
          %v920 = vmul.f32 %v905, %v881
          %v921 = vmul.f32 %v905, %v882
          %v922 = vmul.f32 %v905, %v883
          %v923 = vsel %vm885, %v868, %v907
          %v924 = vsel %vm886, %v869, %v908
          %v925 = vsel %vm887, %v870, %v909
          %v926 = vsel %vm888, %v871, %v910
          %v927 = vsel %vm889, %v872, %v911
          %v928 = vsel %vm890, %v873, %v912
          %v929 = vsel %vm891, %v874, %v913
          %v930 = vsel %vm892, %v875, %v914
          %v931 = vsel %vm893, %v876, %v915
          %v932 = vsel %vm894, %v877, %v916
          %v933 = vsel %vm895, %v878, %v917
          %v934 = vsel %vm896, %v879, %v918
          %v935 = vsel %vm897, %v880, %v919
          %v936 = vsel %vm898, %v881, %v920
          %v937 = vsel %vm899, %v882, %v921
          %v938 = vsel %vm900, %v883, %v922
          %v939 = vld [vmem:[#allocation11] sm:$0xff]
          %v940 = vld [vmem:[#allocation11 + $0x8] sm:$0xff]
          %v941 = vld [vmem:[#allocation11 + $0x10] sm:$0xff]
          %v942 = vld [vmem:[#allocation11 + $0x18] sm:$0xff]
          %v943 = vld [vmem:[#allocation11 + $0x20] sm:$0xff]
          %v944 = vld [vmem:[#allocation11 + $0x28] sm:$0xff]
          %v945 = vld [vmem:[#allocation11 + $0x30] sm:$0xff]
          %v946 = vld [vmem:[#allocation11 + $0x38] sm:$0xff]
          %v947 = vld [vmem:[#allocation11 + $0x40] sm:$0xff]
          %v948 = vld [vmem:[#allocation11 + $0x48] sm:$0xff]
          %v949 = vld [vmem:[#allocation11 + $0x50] sm:$0xff]
          %v950 = vld [vmem:[#allocation11 + $0x58] sm:$0xff]
          %v951 = vld [vmem:[#allocation11 + $0x60] sm:$0xff]
          %v952 = vld [vmem:[#allocation11 + $0x68] sm:$0xff]
          %v953 = vld [vmem:[#allocation11 + $0x70] sm:$0xff]
          %v954 = vld [vmem:[#allocation11 + $0x78] sm:$0xff]
          %v955 = vld [vmem:[%s6] sm:$0x1]
          %v957 = vlaneseq
          %v958 = vshrl.u32 %v957, 7
          %v959 = vsub.s32 0, %v958
          %v960 = vrot.slane %v955, %v959
          %962 = vmatprep.subr.mxu0 0.0
          %963 = vmatpush1.msra.mxu0 %v939
          %964 = vmatprep.subr.mxu0 0.0
          %965 = vmatpush1.msra.mxu0 %v940
          %966 = vmatprep.subr.mxu0 0.0
          %967 = vmatpush1.msra.mxu0 %v941
          %968 = vmatprep.subr.mxu0 0.0
          %969 = vmatpush1.msra.mxu0 %v942
          %970 = vmatprep.subr.mxu0 0.0
          %971 = vmatpush1.msra.mxu0 %v943
          %972 = vmatprep.subr.mxu0 0.0
          %973 = vmatpush1.msra.mxu0 %v944
          %974 = vmatprep.subr.mxu0 0.0
          %975 = vmatpush1.msra.mxu0 %v945
          %976 = vmatprep.subr.mxu0 0.0
          %977 = vmatpush1.msra.mxu0 %v946
          %978 = vmatprep.subr.mxu0 0.0
          %979 = vmatpush1.msra.mxu0 %v947
          %980 = vmatprep.subr.mxu0 0.0
          %981 = vmatpush1.msra.mxu0 %v948
          %982 = vmatprep.subr.mxu0 0.0
          %983 = vmatpush1.msra.mxu0 %v949
          %984 = vmatprep.subr.mxu0 0.0
          %985 = vmatpush1.msra.mxu0 %v950
          %986 = vmatprep.subr.mxu0 0.0
          %987 = vmatpush1.msra.mxu0 %v951
          %988 = vmatprep.subr.mxu0 0.0
          %989 = vmatpush1.msra.mxu0 %v952
          %990 = vmatprep.subr.mxu0 0.0
          %991 = vmatpush1.msra.mxu0 %v953
          %992 = vmatprep.subr.mxu0 0.0
          %993 = vmatpush1.msra.mxu0 %v954
          %994 = vmatprep.subr.mxu0 0.0
          %995 = vmatpush1.msra.mxu0 0.0
          %996 = vmatprep.subr.mxu0 0.0
          %997 = vmatpush1.msra.mxu0 0.0
          %998 = vmatprep.subr.mxu0 0.0
          %999 = vmatpush1.msra.mxu0 0.0
          %1000 = vmatprep.subr.mxu0 0.0
          %1001 = vmatpush1.msra.mxu0 0.0
          %1002 = vmatprep.subr.mxu0 0.0
          %1003 = vmatpush1.msra.mxu0 0.0
          %1004 = vmatprep.subr.mxu0 0.0
          %1005 = vmatpush1.msra.mxu0 0.0
          %1006 = vmatprep.subr.mxu0 0.0
          %1007 = vmatpush1.msra.mxu0 0.0
          %1008 = vmatprep.subr.mxu0 0.0
          %1009 = vmatpush1.msra.mxu0 0.0
          %1010 = vmatprep.subr.mxu0 0.0
          %1011 = vmatpush1.msra.mxu0 0.0
          %1012 = vmatprep.subr.mxu0 0.0
          %1013 = vmatpush1.msra.mxu0 0.0
          %1014 = vmatprep.subr.mxu0 0.0
          %1015 = vmatpush1.msra.mxu0 0.0
          %1016 = vmatprep.subr.mxu0 0.0
          %1017 = vmatpush1.msra.mxu0 0.0
          %1018 = vmatprep.subr.mxu0 0.0
          %1019 = vmatpush1.msra.mxu0 0.0
          %1020 = vmatprep.subr.mxu0 0.0
          %1021 = vmatpush1.msra.mxu0 0.0
          %1022 = vmatprep.subr.mxu0 0.0
          %1023 = vmatpush1.msra.mxu0 0.0
          %1024 = vmatprep.subr.mxu0 0.0
          %1025 = vmatpush1.msra.mxu0 0.0
          %1026 = vmatprep.mubr.f32.mxu0 0.0
          %1027 = vmatmul.mubr.f32.gmra.mrb[0].mxu0 %v923
          %v1028 = vpop.f32.mrb[0].mxu0
          %v1029 = vadd.f32 %v960, %v1028
          %v1030 = vpop.f32.mrb[0].mxu0
          %1031 = vmatprep.mubr.f32.mxu0 0.0
          %1032 = vmatmul.mubr.f32.gmra.mrb[0].mxu0 %v924
          %v1033 = vpop.f32.mrb[0].mxu0
          %v1034 = vadd.f32 %v960, %v1033
          %v1035 = vpop.f32.mrb[0].mxu0
          %1036 = vmatprep.mubr.f32.mxu0 0.0
          %1037 = vmatmul.mubr.f32.gmra.mrb[0].mxu0 %v925
          %v1038 = vpop.f32.mrb[0].mxu0
          %v1039 = vadd.f32 %v960, %v1038
          %v1040 = vpop.f32.mrb[0].mxu0
          %1041 = vmatprep.mubr.f32.mxu0 0.0
          %1042 = vmatmul.mubr.f32.gmra.mrb[0].mxu0 %v926
          %v1043 = vpop.f32.mrb[0].mxu0
          %v1044 = vadd.f32 %v960, %v1043
          %v1045 = vpop.f32.mrb[0].mxu0
          %1046 = vmatprep.mubr.f32.mxu0 0.0
          %1047 = vmatmul.mubr.f32.gmra.mrb[0].mxu0 %v927
          %v1048 = vpop.f32.mrb[0].mxu0
          %v1049 = vadd.f32 %v960, %v1048
          %v1050 = vpop.f32.mrb[0].mxu0
          %1051 = vmatprep.mubr.f32.mxu0 0.0
          %1052 = vmatmul.mubr.f32.gmra.mrb[0].mxu0 %v928
          %v1053 = vpop.f32.mrb[0].mxu0
          %v1054 = vadd.f32 %v960, %v1053
          %v1055 = vpop.f32.mrb[0].mxu0
          %1056 = vmatprep.mubr.f32.mxu0 0.0
          %1057 = vmatmul.mubr.f32.gmra.mrb[0].mxu0 %v929
          %v1058 = vpop.f32.mrb[0].mxu0
          %v1059 = vadd.f32 %v960, %v1058
          %v1060 = vpop.f32.mrb[0].mxu0
          %1061 = vmatprep.mubr.f32.mxu0 0.0
          %1062 = vmatmul.mubr.f32.gmra.mrb[0].mxu0 %v930
          %v1063 = vpop.f32.mrb[0].mxu0
          %v1064 = vadd.f32 %v960, %v1063
          %v1065 = vpop.f32.mrb[0].mxu0
          %1066 = vmatprep.mubr.f32.mxu0 0.0
          %1067 = vmatmul.mubr.f32.gmra.mrb[0].mxu0 %v931
          %v1068 = vpop.f32.mrb[0].mxu0
          %v1069 = vadd.f32 %v960, %v1068
          %v1070 = vpop.f32.mrb[0].mxu0
          %1071 = vmatprep.mubr.f32.mxu0 0.0
          %1072 = vmatmul.mubr.f32.gmra.mrb[0].mxu0 %v932
          %v1073 = vpop.f32.mrb[0].mxu0
          %v1074 = vadd.f32 %v960, %v1073
          %v1075 = vpop.f32.mrb[0].mxu0
          %1076 = vmatprep.mubr.f32.mxu0 0.0
          %1077 = vmatmul.mubr.f32.gmra.mrb[0].mxu0 %v933
          %v1078 = vpop.f32.mrb[0].mxu0
          %v1079 = vadd.f32 %v960, %v1078
          %v1080 = vpop.f32.mrb[0].mxu0
          %1081 = vmatprep.mubr.f32.mxu0 0.0
          %1082 = vmatmul.mubr.f32.gmra.mrb[0].mxu0 %v934
          %v1083 = vpop.f32.mrb[0].mxu0
          %v1084 = vadd.f32 %v960, %v1083
          %v1085 = vpop.f32.mrb[0].mxu0
          %1086 = vmatprep.mubr.f32.mxu0 0.0
          %1087 = vmatmul.mubr.f32.gmra.mrb[0].mxu0 %v935
          %v1088 = vpop.f32.mrb[0].mxu0
          %v1089 = vadd.f32 %v960, %v1088
          %v1090 = vpop.f32.mrb[0].mxu0
          %1091 = vmatprep.mubr.f32.mxu0 0.0
          %1092 = vmatmul.mubr.f32.gmra.mrb[0].mxu0 %v936
          %v1093 = vpop.f32.mrb[0].mxu0
          %v1094 = vadd.f32 %v960, %v1093
          %v1095 = vpop.f32.mrb[0].mxu0
          %1096 = vmatprep.mubr.f32.mxu0 0.0
          %1097 = vmatmul.mubr.f32.gmra.mrb[0].mxu0 %v937
          %v1098 = vpop.f32.mrb[0].mxu0
          %v1099 = vadd.f32 %v960, %v1098
          %v1100 = vpop.f32.mrb[0].mxu0
          %1101 = vmatprep.mubr.f32.mxu0 0.0
          %1102 = vmatmul.mubr.f32.gmra.mrb[0].mxu0 %v938
          %v1103 = vpop.f32.mrb[0].mxu0
          %v1104 = vadd.f32 %v960, %v1103
          %v1105 = vpop.f32.mrb[0].mxu0
          %1106 = vdwg.mxu0
          %1107 = vst [vmem:[%s411] sm:$0xff] %v1029
          %1108 = vst [vmem:[%s411 + $0x8] sm:$0xff] %v1034
          %1109 = vst [vmem:[%s411 + $0x10] sm:$0xff] %v1039
          %1110 = vst [vmem:[%s411 + $0x18] sm:$0xff] %v1044
          %1111 = vst [vmem:[%s411 + $0x20] sm:$0xff] %v1049
          %1112 = vst [vmem:[%s411 + $0x28] sm:$0xff] %v1054
          %1113 = vst [vmem:[%s411 + $0x30] sm:$0xff] %v1059
          %1114 = vst [vmem:[%s411 + $0x38] sm:$0xff] %v1064
          %1115 = vst [vmem:[%s411 + $0x40] sm:$0xff] %v1069
          %1116 = vst [vmem:[%s411 + $0x48] sm:$0xff] %v1074
          %1117 = vst [vmem:[%s411 + $0x50] sm:$0xff] %v1079
          %1118 = vst [vmem:[%s411 + $0x58] sm:$0xff] %v1084
          %1119 = vst [vmem:[%s411 + $0x60] sm:$0xff] %v1089
          %1120 = vst [vmem:[%s411 + $0x68] sm:$0xff] %v1094
          %1121 = vst [vmem:[%s411 + $0x70] sm:$0xff] %v1099
          %1122 = vst [vmem:[%s411 + $0x78] sm:$0xff] %v1104
        $region68: #{tpu_custom_call.1} parent=43 // pred_fallthru
          _
        %s1123 = sand.u32 %s197, 1
        %s1124 = scalar_lea.sflag [#allocation7], %s1123
        %s1125 = sand.u32 %s197, 1
        %s1126 = smul.addr %s1125, 128
        %s1127 = scalar_lea.vmem [#allocation13], %s1126
        // Predicated region
        $region69: #{tpu_custom_call.1} parent=43 // pred_check
          %p1128 = pneg %p207
        $region70: #{tpu_custom_call.1} parent=43 // pred_check_branch
          %1130 = sbr.rel (%p1128) target = $region72
        $region71: #{tpu_custom_call.1} parent=43 // pred_region
          %s1131 = smul.u32 16, %s36
          %s1133 = ssub.s32 2048, 2048
          %1134 = vsyncadd %s1124, %s1133
          %s1135 = smul.addr %s1131, 128
          %s1136 = scalar_lea.hbm %s7, %s1135
          %s1137 = sshll.u32 %s1127, 4
          %s1138 = int_to_ptr.vmem [resolvable:$true] %s1137
          %1143 = dma.vmem_to_hbm [thread:$0]  %s1138, 2048, %s1136, %s1124, 128, 128, 8
        $region72: #{tpu_custom_call.1} parent=43 // pred_fallthru
          _
      $region44: #{tpu_custom_call.1} parent=5 // pred_fallthru
        _
      %p1144 = scmp.le.s32.totalorder 2, %s27
      // Predicated region
      $region73: #{tpu_custom_call.1} parent=5 // pred_check
        %p1145 = pneg %p1144
      $region74: #{tpu_custom_call.1} parent=5 // pred_check_branch
        %1147 = sbr.rel (%p1145) target = $region76
      $region75: #{tpu_custom_call.1} parent=5 // pred_region
        %s1148 = ssub.s32 %s27, 2
        // Predicated region
        $region77: #{tpu_custom_call.1} parent=75 // pred_check
          %p1149 = pneg %p213
        $region78: #{tpu_custom_call.1} parent=75 // pred_check_branch
          %1151 = sbr.rel (%p1149) target = $region80
        $region79: #{tpu_custom_call.1} parent=75 // pred_region
          %s1152 = sand.u32 %s198, 1
          %s1153 = scalar_lea.sflag [#allocation7], %s1152
          %s1154 = sand.u32 %s198, 1
          %s1155 = smul.addr %s1154, 128
          %s1156 = scalar_lea.vmem [#allocation13], %s1155
          %1157 = dma.done %s1153, 2048
        $region80: #{tpu_custom_call.1} parent=75 // pred_fallthru
          _
      $region76: #{tpu_custom_call.1} parent=5 // pred_fallthru
        _
    $region6: #{tpu_custom_call.1} parent=1 // loop_footer
      %s31 = sadd.s32 1, %s27
    $region7: #{tpu_custom_call.1} parent=1 // loop_footer_branch
      %26 = sbr.rel target = $region3
    $region8: #{tpu_custom_call.1} parent=1 // loop_exit
      _
    %1158 = vsyncpa [#allocation6], 1
    %s1159 = scalar_lea.sflag [#allocation6], 1
    %1160 = vsyncpa %s1159, 1
    %1161 = vsyncpa [#allocation9], 1
    %s1162 = scalar_lea.sflag [#allocation9], 1
    %1163 = vsyncpa %s1162, 1
    %1164 = vsyncpa [#allocation12], 1
    %1165 = vsyncpa [#allocation7], 1
    %s1166 = scalar_lea.sflag [#allocation7], 1
    %1167 = vsyncpa %s1166, 1

</llo_original>
